<compile_context>
chip_gen: v7x
topology: tpu7x:2x2x1
jax: 0.10.0
libtpu: 0.0.40
codegen_flags: <defaults>
</compile_context>

<pallas_src>
import math

import jax
import jax.numpy as jnp
from jax.experimental import pallas as pl
from jax.experimental.pallas import tpu as pltpu


def _permute2d_kernel(x_ref, o_ref):
    # Batch dim squeezed out: x_ref block (ts, tf) -> o_ref block (tf, ts).
    o_ref[...] = x_ref[...].T


def _permute3d_kernel(x_ref, o_ref):
    # Batch-folded path: x_ref block (tb, ts, tf) -> o_ref block (tb, tf, ts).
    o_ref[...] = jnp.transpose(x_ref[...], (0, 2, 1))


def _pick_plane_tiles(S, F, itemsize, target_bytes):
    """Dtype-aware 128-aligned (ts, tf) targeting ~target_bytes per VMEM buffer.

    Each tile dim is either a multiple of 128 or the full extent, so both the
    input block (.., ts, tf) and the output block (.., tf, ts) satisfy the
    (8, 128) layout rule.
    """
    target_elems = max(128 * 128, target_bytes // itemsize)

    def cap(dim, limit):
        if dim <= limit:
            return dim                       # full extent: always layout-legal
        return max(128, (limit // 128) * 128)

    side = max(128, (math.isqrt(target_elems) // 128) * 128)
    ts = cap(S, side)
    tf = cap(F, side)
    # If one dim is naturally small, hand its leftover budget to the other so
    # each DMA stays near the target size (amortizes per-grid-step overhead).
    if ts * tf < target_elems:
        if tf == F and ts < S:
            ts = cap(S, max(side, target_elems // max(tf, 1)))
        elif ts == S and tf < F:
            tf = cap(F, max(side, target_elems // max(ts, 1)))
    return ts, tf


def lstm_permuter(
    x,
    *,
    tile_target_bytes=4 << 20,   # ~4 MiB per VMEM buffer (16 MiB double-buffered)
    batch_fold_bytes=4 << 20,    # fold small planes until one block is ~4 MiB
    min_plane_bytes=64 << 10,    # below this, XLA's copy-transpose wins
    core_parallel=False,         # set True on v7x (2 TCs/chip) to split the grid
):
    """Pallas equivalent of x.permute(0, 2, 1) for a rank-3 array (B, S, F)."""
    B, S, F = x.shape
    itemsize = jnp.dtype(x.dtype).itemsize
    plane_bytes = S * F * itemsize

    # Tiny planes: sub-(8,128) per-batch transposes waste the vreg and force
    # masked stores; a dedicated pallas_call cannot beat XLA here.
    if plane_bytes <= min_plane_bytes:
        # TODO(synk): for globally narrow S (<128 lanes) prefer fusing this
        # permute into the consumer's BlockSpec index_map instead.
        return jnp.transpose(x, (0, 2, 1))

    ts, tf = _pick_plane_tiles(S, F, itemsize, tile_target_bytes)

    # Fold batch into the block only when the whole (S, F) plane fits in one
    # tile: keeps DMAs near roofline size and cuts serial grid steps for the
    # small-plane LSTM regime (per-step-overhead bound, not bandwidth bound).
    tb = 1
    if ts == S and tf == F:
        tb = int(min(B, max(1, batch_fold_bytes // max(plane_bytes, 1))))

    grid = (pl.cdiv(B, tb), pl.cdiv(S, ts), pl.cdiv(F, tf))

    if tb == 1:
        # Large-plane path: squeeze the batch dim so the kernel is a clean 2D
        # (ts, tf) -> (tf, ts) transpose (unmasked full-tile vxpose lowering).
        kernel = _permute2d_kernel
        in_spec = pl.BlockSpec((pl.Squeezed(), ts, tf), lambda b, s, f: (b, s, f))
        out_spec = pl.BlockSpec((pl.Squeezed(), tf, ts), lambda b, s, f: (b, f, s))
    else:
        kernel = _permute3d_kernel
        in_spec = pl.BlockSpec((tb, ts, tf), lambda b, s, f: (b, s, f))
        out_spec = pl.BlockSpec((tb, tf, ts), lambda b, s, f: (b, f, s))

    # Every grid axis is an independent copy -> fully parallel.  On v7x,
    # CORE_PARALLEL on the largest axis actually shards it across both
    # TensorCores (plain "parallel" barely changes codegen).
    dims = ["parallel", "parallel", "parallel"]
    if core_parallel:
        dims[max(range(3), key=lambda i: grid[i])] = pltpu.CORE_PARALLEL

    return pl.pallas_call(
        kernel,
        out_shape=jax.ShapeDtypeStruct((B, F, S), x.dtype),
        grid_spec=pltpu.PrefetchScalarGridSpec(
            num_scalar_prefetch=0,
            grid=grid,
            in_specs=[in_spec],
            out_specs=out_spec,
        ),
        compiler_params=pltpu.CompilerParams(
            dimension_semantics=tuple(dims),
            # 4 MiB/buffer * 2 arrays * double buffering ~= 16 MiB; 32 MiB
            # raises v5e's 16 MiB default scoped limit and stays at/below the
            # v6e/v7x defaults (headroom under v7x's 64 MiB physical VMEM).
            vmem_limit_bytes=32 << 20,
        ),
        cost_estimate=pl.CostEstimate(
            flops=0,
            transcendentals=0,
            bytes_accessed=2 * B * S * F * itemsize,
        ),
    )(x)


if __name__ == "__main__":
    key = jax.random.PRNGKey(0)
    k1, k2, k3, k4 = jax.random.split(key, 4)

    # Case 1: tiny LSTM-style (batch, seq, hidden) input — sub-vreg plane,
    # takes the jnp.transpose bailout path.
    B, S, H = 2, 8, 32
    x_small = jax.random.normal(k1, (B, S, H), dtype=jnp.float32)
    out_small = jax.block_until_ready(lstm_permuter(x_small))
    assert out_small.shape == (B, H, S), out_small.shape
    assert jnp.array_equal(out_small, jnp.transpose(x_small, (0, 2, 1))), "mismatch (small)"

    # Case 2: batch-folded kernel path with tb (=2) NOT dividing B (=3):
    # exercises partial leading-dim blocks (the previously untested case).
    B2, S2, F2 = 3, 64, 512
    x_fold = jax.random.normal(k2, (B2, S2, F2), dtype=jnp.float32)
    out_fold = jax.block_until_ready(lstm_permuter(x_fold, batch_fold_bytes=256 << 10))
    assert out_fold.shape == (B2, F2, S2), out_fold.shape
    assert jnp.array_equal(out_fold, jnp.transpose(x_fold, (0, 2, 1))), "mismatch (folded)"

    # Case 3: same folded path in bf16 (dtype-aware sizing, exact permute).
    x_bf16 = jax.random.normal(k3, (B2, S2, F2), dtype=jnp.bfloat16)
    out_bf16 = jax.block_until_ready(lstm_permuter(x_bf16, batch_fold_bytes=256 << 10))
    assert out_bf16.shape == (B2, F2, S2), out_bf16.shape
    assert jnp.array_equal(out_bf16, jnp.transpose(x_bf16, (0, 2, 1))), "mismatch (bf16)"

    # Case 4: squeezed-batch 2D-transpose path with a real (grid > 1) tiling
    # along S (tile_target_bytes shrunk so 256x256 blocks are used).
    B3, S3, F3 = 1, 512, 256
    x_tiled = jax.random.normal(k4, (B3, S3, F3), dtype=jnp.float32)
    out_tiled = jax.block_until_ready(lstm_permuter(x_tiled, tile_target_bytes=256 << 10))
    assert out_tiled.shape == (B3, F3, S3), out_tiled.shape
    assert jnp.array_equal(out_tiled, jnp.transpose(x_tiled, (0, 2, 1))), "mismatch (tiled)"

    print("KERNEL_OK")
</pallas_src>

<mosaic_0001>
module attributes {stable_mosaic.version = 11 : i64} {
  func.func @_permute3d_kernel(%arg0: i32, %arg1: i32, %arg2: i32, %arg3: memref<2x64x512xf32, #tpu.memory_space<vmem>>, %arg4: memref<2x512x64xf32, #tpu.memory_space<vmem>>) attributes {dimension_semantics = [#tpu.dimension_semantics<parallel>, #tpu.dimension_semantics<parallel>, #tpu.dimension_semantics<parallel>], iteration_bounds = array<i64: 2, 1, 1>, scalar_prefetch = 0 : i64, scratch_operands = 0 : i64, tpu.core_type = #tpu.core_type<tc>, window_params = [{transform_indices = @transform_0, window_bounds = array<i64: 2, 64, 512>}, {transform_indices = @transform_1, window_bounds = array<i64: 2, 512, 64>}]} {
    %c0 = arith.constant 0 : index
    %c0_0 = arith.constant 0 : index
    %c0_1 = arith.constant 0 : index
    %0 = vector.load %arg3[%c0, %c0_0, %c0_1] : memref<2x64x512xf32, #tpu.memory_space<vmem>>, vector<2x64x512xf32>
    %1 = tpu.transpose %0, [0, 2, 1] : vector<2x64x512xf32> -> vector<2x512x64xf32>
    %c0_2 = arith.constant 0 : index
    %c0_3 = arith.constant 0 : index
    %c0_4 = arith.constant 0 : index
    %2 = vector.load %arg4[%c0_2, %c0_3, %c0_4] : memref<2x512x64xf32, #tpu.memory_space<vmem>>, vector<2x512x64xf32>
    tpu.vector_store %arg4[%c0_2, %c0_3, %c0_4], %1 {strides = array<i32>} : memref<2x512x64xf32, #tpu.memory_space<vmem>>, vector<2x512x64xf32>,
    return
  }
  func.func @transform_0(%arg0: i32, %arg1: i32, %arg2: i32) -> (i32, i32, i32) {
    %c0_i32 = arith.constant 0 : i32
    return %arg0, %arg1, %arg2 : i32, i32, i32
  }
  func.func @transform_1(%arg0: i32, %arg1: i32, %arg2: i32) -> (i32, i32, i32) {
    %c0_i32 = arith.constant 0 : i32
    return %arg0, %arg2, %arg1 : i32, i32, i32
  }
}

</mosaic_0001>

<llo_original>
// kernel: tpu_custom_call.1
$region0: #{tpu_custom_call.1}
  #allocation0 [shape = 'u32[]', space=smem, size = 0x4, offset = 0x4, fixed_abs, tag = 'smem constant byte address 0x4 - core index']
  #allocation1 [shape = 'u32[144,128]{1,0:T(1,128)}', space=vmem, size = 0x12000, scoped, tag = 'internal scratch']
  %s0 = inlined_call_operand.hbm [shape: f32[3,64,512], index: 0, kind: input, shape index: {}]
  %s1 = inlined_call_operand.vmem [shape: f32[3,512,64], index: 1, kind: output, shape index: {}]
  %s2 = sld [smem:[#allocation0]]
  $region89: #{tpu_custom_call.1} parent=0
    _
  %s4 = ssub.s32 1, %s2
  %s5 = scalar_select 0, %s4, %s2
  $region1: #{tpu_custom_call.1} parent=0
    #allocation2 [shape = 'u8[524288]{0}', space=vmem, size = 0x80000, scoped, tag = 'input window, operand 0']
    #allocation3 [shape = 's32[2]{0}', space=sflag, size = 0x8, scoped, tag = 'scoped memory for tpu_custom_call.1']
    #allocation4 [shape = 'u8[1048576]{0}', space=vmem, size = 0x100000, scoped, tag = 'output window, operand 0']
    %6 = vsyncpa [#allocation3], 0
    %s7 = scalar_lea.sflag [#allocation3], 1
    %8 = vsyncpa %s7, 0
    loop: start=0, step=1, limit=4
    $region2: #{tpu_custom_call.1} parent=1 // loop_pre_header
      _
    $region3: #{tpu_custom_call.1} parent=1 // loop_header
      %s10 = sphi 0, %s14
      %p11 = scmp.ge.s32.totalorder %s10, 4
      %s17 = sphi 0, %s36
      %s18 = sphi 0, %s32
      %s19 = sphi 0, %s28
      %s20 = sphi 0, %s17
      %s21 = sphi 0, %s18
      %s22 = sphi 0, %s19
      %s23 = sphi 0, %s20
      %s24 = sphi 0, %s21
      %s25 = sphi 0, %s22
      %s43 = sphi 0, %s45
      %s46 = sphi 0, %s43
      %s47 = sphi 0, %s46
      %s63 = sphi 0, %s47
      %s73 = sphi 0, %s75
      %s76 = sphi 0, %s73
      %s77 = sphi 0, %s76
      %s93 = sphi 0, %s77
    $region4: #{tpu_custom_call.1} parent=1 // loop_header_branch
      %13 = sbr.rel (%p11) target = $region8
    $region5: #{tpu_custom_call.1} parent=1 // loop_body
      %s15 = ssub.s32 %s10, 1
      %s16 = ssub.s32 %s10, 2
      %s26 = sadd.s32 1, %s19
      %p27 = scmp.ge.s32.totalorder %s26, 1
      %s28 = scalar_select %p27, 0, %s26
      %s29 = sadd.s32 1, %s18
      %s30 = scalar_select %p27, %s29, %s18
      %p31 = scmp.ge.s32.totalorder %s30, 1
      %s32 = scalar_select %p31, 0, %s30
      %s33 = sadd.s32 1, %s17
      %s34 = scalar_select %p31, %s33, %s17
      %p35 = scmp.ge.s32.totalorder %s34, 2
      %s36 = scalar_select %p35, 0, %s34
      %s37 = ssub.s32 %s17, %s36
      %s38 = ssub.s32 %s18, %s32
      %s39 = sor.u32 %s37, %s38
      %s40 = ssub.s32 %s19, %s28
      %s41 = sor.u32 %s39, %s40
      %p42 = scmp.eq.s32.totalorder %s41, 0
      %s44 = sadd.s32 %s43, 1
      %s45 = scalar_select %p42, %s43, %s44
      %p48 = pneg %p42
      %p49 = scmp.eq.s32.totalorder %s10, 1
      %p50 = por %p48, %p49
      %p51 = scmp.ne.s32.totalorder %s43, %s46
      %p52 = scmp.eq.s32.totalorder %s10, 0
      %p53 = por %p51, %p52
      %p54 = scmp.ne.s32.totalorder %s43, %s46
      %p55 = scmp.eq.s32.totalorder %s15, 1
      %p56 = por %p54, %p55
      %p57 = scmp.ne.s32.totalorder %s46, %s47
      %p58 = scmp.eq.s32.totalorder %s15, 0
      %p59 = por %p57, %p58
      %p60 = scmp.ne.s32.totalorder %s46, %s47
      %p61 = scmp.eq.s32.totalorder %s16, 1
      %p62 = por %p60, %p61
      %p64 = scmp.ne.s32.totalorder %s47, %s63
      %p65 = scmp.eq.s32.totalorder %s16, 0
      %p66 = por %p64, %p65
      %s67 = ssub.s32 %s17, %s36
      %s68 = ssub.s32 %s19, %s28
      %s69 = sor.u32 %s67, %s68
      %s70 = ssub.s32 %s18, %s32
      %s71 = sor.u32 %s69, %s70
      %p72 = scmp.eq.s32.totalorder %s71, 0
      %s74 = sadd.s32 %s73, 1
      %s75 = scalar_select %p72, %s73, %s74
      %p78 = pneg %p72
      %p79 = scmp.eq.s32.totalorder %s10, 1
      %p80 = por %p78, %p79
      %p81 = scmp.ne.s32.totalorder %s73, %s76
      %p82 = scmp.eq.s32.totalorder %s10, 0
      %p83 = por %p81, %p82
      %p84 = scmp.ne.s32.totalorder %s73, %s76
      %p85 = scmp.eq.s32.totalorder %s15, 1
      %p86 = por %p84, %p85
      %p87 = scmp.ne.s32.totalorder %s76, %s77
      %p88 = scmp.eq.s32.totalorder %s15, 0
      %p89 = por %p87, %p88
      %p90 = scmp.ne.s32.totalorder %s76, %s77
      %p91 = scmp.eq.s32.totalorder %s16, 1
      %p92 = por %p90, %p91
      %p94 = scmp.ne.s32.totalorder %s77, %s93
      %p95 = scmp.eq.s32.totalorder %s16, 0
      %p96 = por %p94, %p95
      %p97 = scmp.le.s32.totalorder 1, %s10
      %p98 = scmp.lt.s32.totalorder %s10, 3
      %p99 = pnand %p97, %p98
      %p100 = pneg %p99
      // Predicated region
      $region9: #{tpu_custom_call.1} parent=5 // pred_check
        _
      $region10: #{tpu_custom_call.1} parent=5 // pred_check_branch
        %102 = sbr.rel (%p99) target = $region12
      $region11: #{tpu_custom_call.1} parent=5 // pred_region
        %s103 = ssub.s32 %s10, 1
      $region12: #{tpu_custom_call.1} parent=5 // pred_fallthru
        _
      %p104 = scmp.lt.s32.totalorder %s10, 2
      // Predicated region
      $region13: #{tpu_custom_call.1} parent=5 // pred_check
        %p105 = pneg %p104
      $region14: #{tpu_custom_call.1} parent=5 // pred_check_branch
        %107 = sbr.rel (%p105) target = $region16
      $region15: #{tpu_custom_call.1} parent=5 // pred_region
        // Predicated region
        $region17: #{tpu_custom_call.1} parent=15 // pred_check
          %p108 = pneg %p53
        $region18: #{tpu_custom_call.1} parent=15 // pred_check_branch
          %110 = sbr.rel (%p108) target = $region20
        $region19: #{tpu_custom_call.1} parent=15 // pred_region
          %s111 = sand.u32 %s43, 1
          %s112 = scalar_lea.sflag [#allocation3], %s111
          %s113 = sand.u32 %s43, 1
          %s114 = smul.addr %s113, 512
          %s115 = scalar_lea.vmem [#allocation2], %s114
          %s116 = smul.u32 2, %s17
          %s117 = smul.u32 8, %s18
          %s118 = smul.u32 4, %s19
          %s119 = ssub.s32 3, %s116
          %p120 = scmp.lt.s32.totalorder %s119, 2
          %s121 = scalar_select %p120, %s119, 2
          %s122 = smul.u32 128, %s121
          %s123 = smul.u32 %s122, 8
          %s124 = smul.u32 %s123, 4
          %s126 = ssub.s32 8192, %s124
          %127 = vsyncadd %s112, %s126
          %p128 = scmp.ne.s32.totalorder 0, %s124
          %s129 = smul.addr %s117, 4
          %s130 = sadd.s32 %s118, %s129
          %s131 = smul.addr %s116, 32
          %s132 = sadd.s32 %s130, %s131
          %s133 = smul.addr %s132, 128
          %s134 = scalar_lea.hbm %s0, %s133
          %s135 = smul.u32 %s121, 8
          %s136 = smul.u32 32, %s135
          %s137 = sshll.u32 %s115, 4
          %s138 = int_to_ptr.vmem [resolvable:$true] %s137
          %s139 = sshll.u32 %s136, 4
          %143 = dma.hbm_to_vmem [thread:$0]  (%p128), %s134, %s139, %s138, %s112, 512, 512, 32
        $region20: #{tpu_custom_call.1} parent=15 // pred_fallthru
          _
      $region16: #{tpu_custom_call.1} parent=5 // pred_fallthru
        _
      %p144 = scmp.le.s32.totalorder 1, %s10
      %p145 = scmp.lt.s32.totalorder %s10, 3
      %p146 = pnand %p144, %p145
      %p147 = pneg %p146
      // Predicated region
      $region21: #{tpu_custom_call.1} parent=5 // pred_check
        _
      $region22: #{tpu_custom_call.1} parent=5 // pred_check_branch
        %149 = sbr.rel (%p146) target = $region24
      $region23: #{tpu_custom_call.1} parent=5 // pred_region
        %s150 = ssub.s32 %s10, 1
        %s151 = sand.u32 %s46, 1
        %s152 = scalar_lea.sflag [#allocation3], %s151
        %s153 = sand.u32 %s46, 1
        %s154 = smul.addr %s153, 512
        %s155 = scalar_lea.vmem [#allocation2], %s154
        // Predicated region
        $region25: #{tpu_custom_call.1} parent=23 // pred_check
          %p156 = pneg %p59
        $region26: #{tpu_custom_call.1} parent=23 // pred_check_branch
          %158 = sbr.rel (%p156) target = $region28
        $region27: #{tpu_custom_call.1} parent=23 // pred_region
          %159 = dma.done %s152, 8192
        $region28: #{tpu_custom_call.1} parent=23 // pred_fallthru
          _
        %s160 = sand.u32 %s46, 1
        %s161 = scalar_lea.sflag [#allocation3], %s160
        %s162 = sand.u32 %s46, 1
        %s163 = smul.addr %s162, 512
        %s164 = scalar_lea.vmem [#allocation2], %s163
        %p165 = pneg %p59
        %p166 = pneg %p56
        %p167 = pneg %p89
        %p168 = pneg %p86
        %s169 = sand.u32 %s76, 1
        %s170 = sand.u32 %s76, 1
        %s171 = smul.addr %s170, 1024
        %s172 = scalar_lea.vmem [#allocation4], %s171
        %s173 = smul.u32 2, %s20
        %s174 = smul.u32 8, %s21
        %s175 = smul.u32 4, %s22
        %s176 = ssub.s32 3, %s173
        %p177 = scmp.lt.s32.totalorder %s176, 2
        %s178 = scalar_select %p177, %s176, 2
        %s179 = smul.u32 128, %s178
        %s180 = smul.u32 %s179, 8
        %s181 = smul.u32 %s180, 4
        %s182 = smul.u32 2, %s20
        %s183 = smul.u32 64, %s22
        %s184 = ssub.s32 3, %s182
        %p185 = scmp.lt.s32.totalorder %s184, 2
        %s186 = scalar_select %p185, %s184, 2
        %s187 = smul.u32 128, %s186
        %s188 = smul.u32 %s187, 64
        %v189 = vld [vmem:[%s155] sm:$0xff]
        %v190 = vld [vmem:[%s155 + $0x8] sm:$0xff]
        %v191 = vld [vmem:[%s155 + $0x10] sm:$0xff]
        %v192 = vld [vmem:[%s155 + $0x18] sm:$0xff]
        %v193 = vld [vmem:[%s155 + $0x20] sm:$0xff]
        %v194 = vld [vmem:[%s155 + $0x28] sm:$0xff]
        %v195 = vld [vmem:[%s155 + $0x30] sm:$0xff]
        %v196 = vld [vmem:[%s155 + $0x38] sm:$0xff]
        %v197 = vld [vmem:[%s155 + $0x40] sm:$0xff]
        %v198 = vld [vmem:[%s155 + $0x48] sm:$0xff]
        %v199 = vld [vmem:[%s155 + $0x50] sm:$0xff]
        %v200 = vld [vmem:[%s155 + $0x58] sm:$0xff]
        %v201 = vld [vmem:[%s155 + $0x60] sm:$0xff]
        %v202 = vld [vmem:[%s155 + $0x68] sm:$0xff]
        %v203 = vld [vmem:[%s155 + $0x70] sm:$0xff]
        %v204 = vld [vmem:[%s155 + $0x78] sm:$0xff]
        %v205 = vld [vmem:[%s155 + $0x80] sm:$0xff]
        %v206 = vld [vmem:[%s155 + $0x88] sm:$0xff]
        %v207 = vld [vmem:[%s155 + $0x90] sm:$0xff]
        %v208 = vld [vmem:[%s155 + $0x98] sm:$0xff]
        %v209 = vld [vmem:[%s155 + $0xa0] sm:$0xff]
        %v210 = vld [vmem:[%s155 + $0xa8] sm:$0xff]
        %v211 = vld [vmem:[%s155 + $0xb0] sm:$0xff]
        %v212 = vld [vmem:[%s155 + $0xb8] sm:$0xff]
        %v213 = vld [vmem:[%s155 + $0xc0] sm:$0xff]
        %v214 = vld [vmem:[%s155 + $0xc8] sm:$0xff]
        %v215 = vld [vmem:[%s155 + $0xd0] sm:$0xff]
        %v216 = vld [vmem:[%s155 + $0xd8] sm:$0xff]
        %v217 = vld [vmem:[%s155 + $0xe0] sm:$0xff]
        %v218 = vld [vmem:[%s155 + $0xe8] sm:$0xff]
        %v219 = vld [vmem:[%s155 + $0xf0] sm:$0xff]
        %v220 = vld [vmem:[%s155 + $0xf8] sm:$0xff]
        %v221 = vld [vmem:[%s155 + $0x100] sm:$0xff]
        %v222 = vld [vmem:[%s155 + $0x108] sm:$0xff]
        %v223 = vld [vmem:[%s155 + $0x110] sm:$0xff]
        %v224 = vld [vmem:[%s155 + $0x118] sm:$0xff]
        %v225 = vld [vmem:[%s155 + $0x120] sm:$0xff]
        %v226 = vld [vmem:[%s155 + $0x128] sm:$0xff]
        %v227 = vld [vmem:[%s155 + $0x130] sm:$0xff]
        %v228 = vld [vmem:[%s155 + $0x138] sm:$0xff]
        %v229 = vld [vmem:[%s155 + $0x140] sm:$0xff]
        %v230 = vld [vmem:[%s155 + $0x148] sm:$0xff]
        %v231 = vld [vmem:[%s155 + $0x150] sm:$0xff]
        %v232 = vld [vmem:[%s155 + $0x158] sm:$0xff]
        %v233 = vld [vmem:[%s155 + $0x160] sm:$0xff]
        %v234 = vld [vmem:[%s155 + $0x168] sm:$0xff]
        %v235 = vld [vmem:[%s155 + $0x170] sm:$0xff]
        %v236 = vld [vmem:[%s155 + $0x178] sm:$0xff]
        %v237 = vld [vmem:[%s155 + $0x180] sm:$0xff]
        %v238 = vld [vmem:[%s155 + $0x188] sm:$0xff]
        %v239 = vld [vmem:[%s155 + $0x190] sm:$0xff]
        %v240 = vld [vmem:[%s155 + $0x198] sm:$0xff]
        %v241 = vld [vmem:[%s155 + $0x1a0] sm:$0xff]
        %v242 = vld [vmem:[%s155 + $0x1a8] sm:$0xff]
        %v243 = vld [vmem:[%s155 + $0x1b0] sm:$0xff]
        %v244 = vld [vmem:[%s155 + $0x1b8] sm:$0xff]
        %v245 = vld [vmem:[%s155 + $0x1c0] sm:$0xff]
        %v246 = vld [vmem:[%s155 + $0x1c8] sm:$0xff]
        %v247 = vld [vmem:[%s155 + $0x1d0] sm:$0xff]
        %v248 = vld [vmem:[%s155 + $0x1d8] sm:$0xff]
        %v249 = vld [vmem:[%s155 + $0x1e0] sm:$0xff]
        %v250 = vld [vmem:[%s155 + $0x1e8] sm:$0xff]
        %v251 = vld [vmem:[%s155 + $0x1f0] sm:$0xff]
        %v252 = vld [vmem:[%s155 + $0x1f8] sm:$0xff]
        %253 = vxpose.xlu0.b32.start [1/16] %v189, 128
        %254 = vxpose.xlu0.b32.cont [2/16] %v193, 128
        %255 = vxpose.xlu0.b32.cont [3/16] %v197, 128
        %256 = vxpose.xlu0.b32.cont [4/16] %v201, 128
        %257 = vxpose.xlu0.b32.cont [5/16] %v205, 128
        %258 = vxpose.xlu0.b32.cont [6/16] %v209, 128
        %259 = vxpose.xlu0.b32.cont [7/16] %v213, 128
        %260 = vxpose.xlu0.b32.cont [8/16] %v217, 128
        %261 = vxpose.xlu0.b32.cont [9/16] 0.0, 128
        %262 = vxpose.xlu0.b32.cont [10/16] 0.0, 128
        %263 = vxpose.xlu0.b32.cont [11/16] 0.0, 128
        %264 = vxpose.xlu0.b32.cont [12/16] 0.0, 128
        %265 = vxpose.xlu0.b32.cont [13/16] 0.0, 128
        %266 = vxpose.xlu0.b32.cont [14/16] 0.0, 128
        %267 = vxpose.xlu0.b32.cont [15/16] 0.0, 128
        %268 = vxpose.xlu0.b32.end [16/16] 0.0, 128
        %v269 = vpop.trf.xlu0
        %v270 = vpop.trf.xlu0
        %v271 = vpop.trf.xlu0
        %v272 = vpop.trf.xlu0
        %v273 = vpop.trf.xlu0
        %v274 = vpop.trf.xlu0
        %v275 = vpop.trf.xlu0
        %v276 = vpop.trf.xlu0
        %v277 = vpop.trf.xlu0
        %v278 = vpop.trf.xlu0
        %v279 = vpop.trf.xlu0
        %v280 = vpop.trf.xlu0
        %v281 = vpop.trf.xlu0
        %v282 = vpop.trf.xlu0
        %v283 = vpop.trf.xlu0
        %v284 = vpop.trf.xlu0
        %285 = vxpose.xlu0.b32.start [1/16] %v190, 128
        %286 = vxpose.xlu0.b32.cont [2/16] %v194, 128
        %287 = vxpose.xlu0.b32.cont [3/16] %v198, 128
        %288 = vxpose.xlu0.b32.cont [4/16] %v202, 128
        %289 = vxpose.xlu0.b32.cont [5/16] %v206, 128
        %290 = vxpose.xlu0.b32.cont [6/16] %v210, 128
        %291 = vxpose.xlu0.b32.cont [7/16] %v214, 128
        %292 = vxpose.xlu0.b32.cont [8/16] %v218, 128
        %293 = vxpose.xlu0.b32.cont [9/16] 0.0, 128
        %294 = vxpose.xlu0.b32.cont [10/16] 0.0, 128
        %295 = vxpose.xlu0.b32.cont [11/16] 0.0, 128
        %296 = vxpose.xlu0.b32.cont [12/16] 0.0, 128
        %297 = vxpose.xlu0.b32.cont [13/16] 0.0, 128
        %298 = vxpose.xlu0.b32.cont [14/16] 0.0, 128
        %299 = vxpose.xlu0.b32.cont [15/16] 0.0, 128
        %300 = vxpose.xlu0.b32.end [16/16] 0.0, 128
        %v301 = vpop.trf.xlu0
        %v302 = vpop.trf.xlu0
        %v303 = vpop.trf.xlu0
        %v304 = vpop.trf.xlu0
        %v305 = vpop.trf.xlu0
        %v306 = vpop.trf.xlu0
        %v307 = vpop.trf.xlu0
        %v308 = vpop.trf.xlu0
        %v309 = vpop.trf.xlu0
        %v310 = vpop.trf.xlu0
        %v311 = vpop.trf.xlu0
        %v312 = vpop.trf.xlu0
        %v313 = vpop.trf.xlu0
        %v314 = vpop.trf.xlu0
        %v315 = vpop.trf.xlu0
        %v316 = vpop.trf.xlu0
        %317 = vxpose.xlu0.b32.start [1/16] %v191, 128
        %318 = vxpose.xlu0.b32.cont [2/16] %v195, 128
        %319 = vxpose.xlu0.b32.cont [3/16] %v199, 128
        %320 = vxpose.xlu0.b32.cont [4/16] %v203, 128
        %321 = vxpose.xlu0.b32.cont [5/16] %v207, 128
        %322 = vxpose.xlu0.b32.cont [6/16] %v211, 128
        %323 = vxpose.xlu0.b32.cont [7/16] %v215, 128
        %324 = vxpose.xlu0.b32.cont [8/16] %v219, 128
        %325 = vxpose.xlu0.b32.cont [9/16] 0.0, 128
        %326 = vxpose.xlu0.b32.cont [10/16] 0.0, 128
        %327 = vxpose.xlu0.b32.cont [11/16] 0.0, 128
        %328 = vxpose.xlu0.b32.cont [12/16] 0.0, 128
        %329 = vxpose.xlu0.b32.cont [13/16] 0.0, 128
        %330 = vxpose.xlu0.b32.cont [14/16] 0.0, 128
        %331 = vxpose.xlu0.b32.cont [15/16] 0.0, 128
        %332 = vxpose.xlu0.b32.end [16/16] 0.0, 128
        %v333 = vpop.trf.xlu0
        %v334 = vpop.trf.xlu0
        %v335 = vpop.trf.xlu0
        %v336 = vpop.trf.xlu0
        %v337 = vpop.trf.xlu0
        %v338 = vpop.trf.xlu0
        %v339 = vpop.trf.xlu0
        %v340 = vpop.trf.xlu0
        %v341 = vpop.trf.xlu0
        %v342 = vpop.trf.xlu0
        %v343 = vpop.trf.xlu0
        %v344 = vpop.trf.xlu0
        %v345 = vpop.trf.xlu0
        %v346 = vpop.trf.xlu0
        %v347 = vpop.trf.xlu0
        %v348 = vpop.trf.xlu0
        %349 = vxpose.xlu0.b32.start [1/16] %v192, 128
        %350 = vxpose.xlu0.b32.cont [2/16] %v196, 128
        %351 = vxpose.xlu0.b32.cont [3/16] %v200, 128
        %352 = vxpose.xlu0.b32.cont [4/16] %v204, 128
        %353 = vxpose.xlu0.b32.cont [5/16] %v208, 128
        %354 = vxpose.xlu0.b32.cont [6/16] %v212, 128
        %355 = vxpose.xlu0.b32.cont [7/16] %v216, 128
        %356 = vxpose.xlu0.b32.cont [8/16] %v220, 128
        %357 = vxpose.xlu0.b32.cont [9/16] 0.0, 128
        %358 = vxpose.xlu0.b32.cont [10/16] 0.0, 128
        %359 = vxpose.xlu0.b32.cont [11/16] 0.0, 128
        %360 = vxpose.xlu0.b32.cont [12/16] 0.0, 128
        %361 = vxpose.xlu0.b32.cont [13/16] 0.0, 128
        %362 = vxpose.xlu0.b32.cont [14/16] 0.0, 128
        %363 = vxpose.xlu0.b32.cont [15/16] 0.0, 128
        %364 = vxpose.xlu0.b32.end [16/16] 0.0, 128
        %v365 = vpop.trf.xlu0
        %v366 = vpop.trf.xlu0
        %v367 = vpop.trf.xlu0
        %v368 = vpop.trf.xlu0
        %v369 = vpop.trf.xlu0
        %v370 = vpop.trf.xlu0
        %v371 = vpop.trf.xlu0
        %v372 = vpop.trf.xlu0
        %v373 = vpop.trf.xlu0
        %v374 = vpop.trf.xlu0
        %v375 = vpop.trf.xlu0
        %v376 = vpop.trf.xlu0
        %v377 = vpop.trf.xlu0
        %v378 = vpop.trf.xlu0
        %v379 = vpop.trf.xlu0
        %v380 = vpop.trf.xlu0
        %381 = vxpose.xlu0.b32.start [1/16] %v221, 128
        %382 = vxpose.xlu0.b32.cont [2/16] %v225, 128
        %383 = vxpose.xlu0.b32.cont [3/16] %v229, 128
        %384 = vxpose.xlu0.b32.cont [4/16] %v233, 128
        %385 = vxpose.xlu0.b32.cont [5/16] %v237, 128
        %386 = vxpose.xlu0.b32.cont [6/16] %v241, 128
        %387 = vxpose.xlu0.b32.cont [7/16] %v245, 128
        %388 = vxpose.xlu0.b32.cont [8/16] %v249, 128
        %389 = vxpose.xlu0.b32.cont [9/16] 0.0, 128
        %390 = vxpose.xlu0.b32.cont [10/16] 0.0, 128
        %391 = vxpose.xlu0.b32.cont [11/16] 0.0, 128
        %392 = vxpose.xlu0.b32.cont [12/16] 0.0, 128
        %393 = vxpose.xlu0.b32.cont [13/16] 0.0, 128
        %394 = vxpose.xlu0.b32.cont [14/16] 0.0, 128
        %395 = vxpose.xlu0.b32.cont [15/16] 0.0, 128
        %396 = vxpose.xlu0.b32.end [16/16] 0.0, 128
        %v397 = vpop.trf.xlu0
        %v398 = vpop.trf.xlu0
        %v399 = vpop.trf.xlu0
        %v400 = vpop.trf.xlu0
        %v401 = vpop.trf.xlu0
        %v402 = vpop.trf.xlu0
        %v403 = vpop.trf.xlu0
        %v404 = vpop.trf.xlu0
        %v405 = vpop.trf.xlu0
        %v406 = vpop.trf.xlu0
        %v407 = vpop.trf.xlu0
        %v408 = vpop.trf.xlu0
        %v409 = vpop.trf.xlu0
        %v410 = vpop.trf.xlu0
        %v411 = vpop.trf.xlu0
        %v412 = vpop.trf.xlu0
        %413 = vxpose.xlu0.b32.start [1/16] %v222, 128
        %414 = vxpose.xlu0.b32.cont [2/16] %v226, 128
        %415 = vxpose.xlu0.b32.cont [3/16] %v230, 128
        %416 = vxpose.xlu0.b32.cont [4/16] %v234, 128
        %417 = vxpose.xlu0.b32.cont [5/16] %v238, 128
        %418 = vxpose.xlu0.b32.cont [6/16] %v242, 128
        %419 = vxpose.xlu0.b32.cont [7/16] %v246, 128
        %420 = vxpose.xlu0.b32.cont [8/16] %v250, 128
        %421 = vxpose.xlu0.b32.cont [9/16] 0.0, 128
        %422 = vxpose.xlu0.b32.cont [10/16] 0.0, 128
        %423 = vxpose.xlu0.b32.cont [11/16] 0.0, 128
        %424 = vxpose.xlu0.b32.cont [12/16] 0.0, 128
        %425 = vxpose.xlu0.b32.cont [13/16] 0.0, 128
        %426 = vxpose.xlu0.b32.cont [14/16] 0.0, 128
        %427 = vxpose.xlu0.b32.cont [15/16] 0.0, 128
        %428 = vxpose.xlu0.b32.end [16/16] 0.0, 128
        %v429 = vpop.trf.xlu0
        %v430 = vpop.trf.xlu0
        %v431 = vpop.trf.xlu0
        %v432 = vpop.trf.xlu0
        %v433 = vpop.trf.xlu0
        %v434 = vpop.trf.xlu0
        %v435 = vpop.trf.xlu0
        %v436 = vpop.trf.xlu0
        %v437 = vpop.trf.xlu0
        %v438 = vpop.trf.xlu0
        %v439 = vpop.trf.xlu0
        %v440 = vpop.trf.xlu0
        %v441 = vpop.trf.xlu0
        %v442 = vpop.trf.xlu0
        %v443 = vpop.trf.xlu0
        %v444 = vpop.trf.xlu0
        %445 = vxpose.xlu0.b32.start [1/16] %v223, 128
        %446 = vxpose.xlu0.b32.cont [2/16] %v227, 128
        %447 = vxpose.xlu0.b32.cont [3/16] %v231, 128
        %448 = vxpose.xlu0.b32.cont [4/16] %v235, 128
        %449 = vxpose.xlu0.b32.cont [5/16] %v239, 128
        %450 = vxpose.xlu0.b32.cont [6/16] %v243, 128
        %451 = vxpose.xlu0.b32.cont [7/16] %v247, 128
        %452 = vxpose.xlu0.b32.cont [8/16] %v251, 128
        %453 = vxpose.xlu0.b32.cont [9/16] 0.0, 128
        %454 = vxpose.xlu0.b32.cont [10/16] 0.0, 128
        %455 = vxpose.xlu0.b32.cont [11/16] 0.0, 128
        %456 = vxpose.xlu0.b32.cont [12/16] 0.0, 128
        %457 = vxpose.xlu0.b32.cont [13/16] 0.0, 128
        %458 = vxpose.xlu0.b32.cont [14/16] 0.0, 128
        %459 = vxpose.xlu0.b32.cont [15/16] 0.0, 128
        %460 = vxpose.xlu0.b32.end [16/16] 0.0, 128
        %v461 = vpop.trf.xlu0
        %v462 = vpop.trf.xlu0
        %v463 = vpop.trf.xlu0
        %v464 = vpop.trf.xlu0
        %v465 = vpop.trf.xlu0
        %v466 = vpop.trf.xlu0
        %v467 = vpop.trf.xlu0
        %v468 = vpop.trf.xlu0
        %v469 = vpop.trf.xlu0
        %v470 = vpop.trf.xlu0
        %v471 = vpop.trf.xlu0
        %v472 = vpop.trf.xlu0
        %v473 = vpop.trf.xlu0
        %v474 = vpop.trf.xlu0
        %v475 = vpop.trf.xlu0
        %v476 = vpop.trf.xlu0
        %477 = vxpose.xlu0.b32.start [1/16] %v224, 128
        %478 = vxpose.xlu0.b32.cont [2/16] %v228, 128
        %479 = vxpose.xlu0.b32.cont [3/16] %v232, 128
        %480 = vxpose.xlu0.b32.cont [4/16] %v236, 128
        %481 = vxpose.xlu0.b32.cont [5/16] %v240, 128
        %482 = vxpose.xlu0.b32.cont [6/16] %v244, 128
        %483 = vxpose.xlu0.b32.cont [7/16] %v248, 128
        %484 = vxpose.xlu0.b32.cont [8/16] %v252, 128
        %485 = vxpose.xlu0.b32.cont [9/16] 0.0, 128
        %486 = vxpose.xlu0.b32.cont [10/16] 0.0, 128
        %487 = vxpose.xlu0.b32.cont [11/16] 0.0, 128
        %488 = vxpose.xlu0.b32.cont [12/16] 0.0, 128
        %489 = vxpose.xlu0.b32.cont [13/16] 0.0, 128
        %490 = vxpose.xlu0.b32.cont [14/16] 0.0, 128
        %491 = vxpose.xlu0.b32.cont [15/16] 0.0, 128
        %492 = vxpose.xlu0.b32.end [16/16] 0.0, 128
        %v493 = vpop.trf.xlu0
        %v494 = vpop.trf.xlu0
        %v495 = vpop.trf.xlu0
        %v496 = vpop.trf.xlu0
        %v497 = vpop.trf.xlu0
        %v498 = vpop.trf.xlu0
        %v499 = vpop.trf.xlu0
        %v500 = vpop.trf.xlu0
        %v501 = vpop.trf.xlu0
        %v502 = vpop.trf.xlu0
        %v503 = vpop.trf.xlu0
        %v504 = vpop.trf.xlu0
        %v505 = vpop.trf.xlu0
        %v506 = vpop.trf.xlu0
        %v507 = vpop.trf.xlu0
        %v508 = vpop.trf.xlu0
        %vm509 = vcmask 523264
        %510 = vst.msk [vmem:[%s172] sm:$0xff] %vm509, %v269
        %511 = vst.msk [vmem:[%s172 + $0x8] sm:$0xff] %vm509, %v270
        %512 = vst.msk [vmem:[%s172 + $0x10] sm:$0xff] %vm509, %v271
        %513 = vst.msk [vmem:[%s172 + $0x18] sm:$0xff] %vm509, %v272
        %514 = vst.msk [vmem:[%s172 + $0x20] sm:$0xff] %vm509, %v273
        %515 = vst.msk [vmem:[%s172 + $0x28] sm:$0xff] %vm509, %v274
        %516 = vst.msk [vmem:[%s172 + $0x30] sm:$0xff] %vm509, %v275
        %517 = vst.msk [vmem:[%s172 + $0x38] sm:$0xff] %vm509, %v276
        %518 = vst.msk [vmem:[%s172 + $0x40] sm:$0xff] %vm509, %v277
        %519 = vst.msk [vmem:[%s172 + $0x48] sm:$0xff] %vm509, %v278
        %520 = vst.msk [vmem:[%s172 + $0x50] sm:$0xff] %vm509, %v279
        %521 = vst.msk [vmem:[%s172 + $0x58] sm:$0xff] %vm509, %v280
        %522 = vst.msk [vmem:[%s172 + $0x60] sm:$0xff] %vm509, %v281
        %523 = vst.msk [vmem:[%s172 + $0x68] sm:$0xff] %vm509, %v282
        %524 = vst.msk [vmem:[%s172 + $0x70] sm:$0xff] %vm509, %v283
        %525 = vst.msk [vmem:[%s172 + $0x78] sm:$0xff] %vm509, %v284
        %526 = vst.msk [vmem:[%s172 + $0x80] sm:$0xff] %vm509, %v301
        %527 = vst.msk [vmem:[%s172 + $0x88] sm:$0xff] %vm509, %v302
        %528 = vst.msk [vmem:[%s172 + $0x90] sm:$0xff] %vm509, %v303
        %529 = vst.msk [vmem:[%s172 + $0x98] sm:$0xff] %vm509, %v304
        %530 = vst.msk [vmem:[%s172 + $0xa0] sm:$0xff] %vm509, %v305
        %531 = vst.msk [vmem:[%s172 + $0xa8] sm:$0xff] %vm509, %v306
        %532 = vst.msk [vmem:[%s172 + $0xb0] sm:$0xff] %vm509, %v307
        %533 = vst.msk [vmem:[%s172 + $0xb8] sm:$0xff] %vm509, %v308
        %534 = vst.msk [vmem:[%s172 + $0xc0] sm:$0xff] %vm509, %v309
        %535 = vst.msk [vmem:[%s172 + $0xc8] sm:$0xff] %vm509, %v310
        %536 = vst.msk [vmem:[%s172 + $0xd0] sm:$0xff] %vm509, %v311
        %537 = vst.msk [vmem:[%s172 + $0xd8] sm:$0xff] %vm509, %v312
        %538 = vst.msk [vmem:[%s172 + $0xe0] sm:$0xff] %vm509, %v313
        %539 = vst.msk [vmem:[%s172 + $0xe8] sm:$0xff] %vm509, %v314
        %540 = vst.msk [vmem:[%s172 + $0xf0] sm:$0xff] %vm509, %v315
        %541 = vst.msk [vmem:[%s172 + $0xf8] sm:$0xff] %vm509, %v316
        %542 = vst.msk [vmem:[%s172 + $0x100] sm:$0xff] %vm509, %v333
        %543 = vst.msk [vmem:[%s172 + $0x108] sm:$0xff] %vm509, %v334
        %544 = vst.msk [vmem:[%s172 + $0x110] sm:$0xff] %vm509, %v335
        %545 = vst.msk [vmem:[%s172 + $0x118] sm:$0xff] %vm509, %v336
        %546 = vst.msk [vmem:[%s172 + $0x120] sm:$0xff] %vm509, %v337
        %547 = vst.msk [vmem:[%s172 + $0x128] sm:$0xff] %vm509, %v338
        %548 = vst.msk [vmem:[%s172 + $0x130] sm:$0xff] %vm509, %v339
        %549 = vst.msk [vmem:[%s172 + $0x138] sm:$0xff] %vm509, %v340
        %550 = vst.msk [vmem:[%s172 + $0x140] sm:$0xff] %vm509, %v341
        %551 = vst.msk [vmem:[%s172 + $0x148] sm:$0xff] %vm509, %v342
        %552 = vst.msk [vmem:[%s172 + $0x150] sm:$0xff] %vm509, %v343
        %553 = vst.msk [vmem:[%s172 + $0x158] sm:$0xff] %vm509, %v344
        %554 = vst.msk [vmem:[%s172 + $0x160] sm:$0xff] %vm509, %v345
        %555 = vst.msk [vmem:[%s172 + $0x168] sm:$0xff] %vm509, %v346
        %556 = vst.msk [vmem:[%s172 + $0x170] sm:$0xff] %vm509, %v347
        %557 = vst.msk [vmem:[%s172 + $0x178] sm:$0xff] %vm509, %v348
        %558 = vst.msk [vmem:[%s172 + $0x180] sm:$0xff] %vm509, %v365
        %559 = vst.msk [vmem:[%s172 + $0x188] sm:$0xff] %vm509, %v366
        %560 = vst.msk [vmem:[%s172 + $0x190] sm:$0xff] %vm509, %v367
        %561 = vst.msk [vmem:[%s172 + $0x198] sm:$0xff] %vm509, %v368
        %562 = vst.msk [vmem:[%s172 + $0x1a0] sm:$0xff] %vm509, %v369
        %563 = vst.msk [vmem:[%s172 + $0x1a8] sm:$0xff] %vm509, %v370
        %564 = vst.msk [vmem:[%s172 + $0x1b0] sm:$0xff] %vm509, %v371
        %565 = vst.msk [vmem:[%s172 + $0x1b8] sm:$0xff] %vm509, %v372
        %566 = vst.msk [vmem:[%s172 + $0x1c0] sm:$0xff] %vm509, %v373
        %567 = vst.msk [vmem:[%s172 + $0x1c8] sm:$0xff] %vm509, %v374
        %568 = vst.msk [vmem:[%s172 + $0x1d0] sm:$0xff] %vm509, %v375
        %569 = vst.msk [vmem:[%s172 + $0x1d8] sm:$0xff] %vm509, %v376
        %570 = vst.msk [vmem:[%s172 + $0x1e0] sm:$0xff] %vm509, %v377
        %571 = vst.msk [vmem:[%s172 + $0x1e8] sm:$0xff] %vm509, %v378
        %572 = vst.msk [vmem:[%s172 + $0x1f0] sm:$0xff] %vm509, %v379
        %573 = vst.msk [vmem:[%s172 + $0x1f8] sm:$0xff] %vm509, %v380
        %574 = vst.msk [vmem:[%s172 + $0x200] sm:$0xff] %vm509, %v397
        %575 = vst.msk [vmem:[%s172 + $0x208] sm:$0xff] %vm509, %v398
        %576 = vst.msk [vmem:[%s172 + $0x210] sm:$0xff] %vm509, %v399
        %577 = vst.msk [vmem:[%s172 + $0x218] sm:$0xff] %vm509, %v400
        %578 = vst.msk [vmem:[%s172 + $0x220] sm:$0xff] %vm509, %v401
        %579 = vst.msk [vmem:[%s172 + $0x228] sm:$0xff] %vm509, %v402
        %580 = vst.msk [vmem:[%s172 + $0x230] sm:$0xff] %vm509, %v403
        %581 = vst.msk [vmem:[%s172 + $0x238] sm:$0xff] %vm509, %v404
        %582 = vst.msk [vmem:[%s172 + $0x240] sm:$0xff] %vm509, %v405
        %583 = vst.msk [vmem:[%s172 + $0x248] sm:$0xff] %vm509, %v406
        %584 = vst.msk [vmem:[%s172 + $0x250] sm:$0xff] %vm509, %v407
        %585 = vst.msk [vmem:[%s172 + $0x258] sm:$0xff] %vm509, %v408
        %586 = vst.msk [vmem:[%s172 + $0x260] sm:$0xff] %vm509, %v409
        %587 = vst.msk [vmem:[%s172 + $0x268] sm:$0xff] %vm509, %v410
        %588 = vst.msk [vmem:[%s172 + $0x270] sm:$0xff] %vm509, %v411
        %589 = vst.msk [vmem:[%s172 + $0x278] sm:$0xff] %vm509, %v412
        %590 = vst.msk [vmem:[%s172 + $0x280] sm:$0xff] %vm509, %v429
        %591 = vst.msk [vmem:[%s172 + $0x288] sm:$0xff] %vm509, %v430
        %592 = vst.msk [vmem:[%s172 + $0x290] sm:$0xff] %vm509, %v431
        %593 = vst.msk [vmem:[%s172 + $0x298] sm:$0xff] %vm509, %v432
        %594 = vst.msk [vmem:[%s172 + $0x2a0] sm:$0xff] %vm509, %v433
        %595 = vst.msk [vmem:[%s172 + $0x2a8] sm:$0xff] %vm509, %v434
        %596 = vst.msk [vmem:[%s172 + $0x2b0] sm:$0xff] %vm509, %v435
        %597 = vst.msk [vmem:[%s172 + $0x2b8] sm:$0xff] %vm509, %v436
        %598 = vst.msk [vmem:[%s172 + $0x2c0] sm:$0xff] %vm509, %v437
        %599 = vst.msk [vmem:[%s172 + $0x2c8] sm:$0xff] %vm509, %v438
        %600 = vst.msk [vmem:[%s172 + $0x2d0] sm:$0xff] %vm509, %v439
        %601 = vst.msk [vmem:[%s172 + $0x2d8] sm:$0xff] %vm509, %v440
        %602 = vst.msk [vmem:[%s172 + $0x2e0] sm:$0xff] %vm509, %v441
        %603 = vst.msk [vmem:[%s172 + $0x2e8] sm:$0xff] %vm509, %v442
        %604 = vst.msk [vmem:[%s172 + $0x2f0] sm:$0xff] %vm509, %v443
        %605 = vst.msk [vmem:[%s172 + $0x2f8] sm:$0xff] %vm509, %v444
        %606 = vst.msk [vmem:[%s172 + $0x300] sm:$0xff] %vm509, %v461
        %607 = vst.msk [vmem:[%s172 + $0x308] sm:$0xff] %vm509, %v462
        %608 = vst.msk [vmem:[%s172 + $0x310] sm:$0xff] %vm509, %v463
        %609 = vst.msk [vmem:[%s172 + $0x318] sm:$0xff] %vm509, %v464
        %610 = vst.msk [vmem:[%s172 + $0x320] sm:$0xff] %vm509, %v465
        %611 = vst.msk [vmem:[%s172 + $0x328] sm:$0xff] %vm509, %v466
        %612 = vst.msk [vmem:[%s172 + $0x330] sm:$0xff] %vm509, %v467
        %613 = vst.msk [vmem:[%s172 + $0x338] sm:$0xff] %vm509, %v468
        %614 = vst.msk [vmem:[%s172 + $0x340] sm:$0xff] %vm509, %v469
        %615 = vst.msk [vmem:[%s172 + $0x348] sm:$0xff] %vm509, %v470
        %616 = vst.msk [vmem:[%s172 + $0x350] sm:$0xff] %vm509, %v471
        %617 = vst.msk [vmem:[%s172 + $0x358] sm:$0xff] %vm509, %v472
        %618 = vst.msk [vmem:[%s172 + $0x360] sm:$0xff] %vm509, %v473
        %619 = vst.msk [vmem:[%s172 + $0x368] sm:$0xff] %vm509, %v474
        %620 = vst.msk [vmem:[%s172 + $0x370] sm:$0xff] %vm509, %v475
        %621 = vst.msk [vmem:[%s172 + $0x378] sm:$0xff] %vm509, %v476
        %622 = vst.msk [vmem:[%s172 + $0x380] sm:$0xff] %vm509, %v493
        %623 = vst.msk [vmem:[%s172 + $0x388] sm:$0xff] %vm509, %v494
        %624 = vst.msk [vmem:[%s172 + $0x390] sm:$0xff] %vm509, %v495
        %625 = vst.msk [vmem:[%s172 + $0x398] sm:$0xff] %vm509, %v496
        %626 = vst.msk [vmem:[%s172 + $0x3a0] sm:$0xff] %vm509, %v497
        %627 = vst.msk [vmem:[%s172 + $0x3a8] sm:$0xff] %vm509, %v498
        %628 = vst.msk [vmem:[%s172 + $0x3b0] sm:$0xff] %vm509, %v499
        %629 = vst.msk [vmem:[%s172 + $0x3b8] sm:$0xff] %vm509, %v500
        %630 = vst.msk [vmem:[%s172 + $0x3c0] sm:$0xff] %vm509, %v501
        %631 = vst.msk [vmem:[%s172 + $0x3c8] sm:$0xff] %vm509, %v502
        %632 = vst.msk [vmem:[%s172 + $0x3d0] sm:$0xff] %vm509, %v503
        %633 = vst.msk [vmem:[%s172 + $0x3d8] sm:$0xff] %vm509, %v504
        %634 = vst.msk [vmem:[%s172 + $0x3e0] sm:$0xff] %vm509, %v505
        %635 = vst.msk [vmem:[%s172 + $0x3e8] sm:$0xff] %vm509, %v506
        %636 = vst.msk [vmem:[%s172 + $0x3f0] sm:$0xff] %vm509, %v507
        %637 = vst.msk [vmem:[%s172 + $0x3f8] sm:$0xff] %vm509, %v508
        %s638 = sand.u32 %s76, 1
        %s639 = sand.u32 %s76, 1
        %s640 = smul.addr %s639, 1024
        %s641 = scalar_lea.vmem [#allocation4], %s640
        // Predicated region
        $region29: #{tpu_custom_call.1} parent=23 // pred_check
          %p642 = pneg %p86
        $region30: #{tpu_custom_call.1} parent=23 // pred_check_branch
          %644 = sbr.rel (%p642) target = $region32
        $region31: #{tpu_custom_call.1} parent=23 // pred_region
          %s645 = smul.u32 2, %s20
          %s646 = smul.u32 64, %s22
          %s647 = ssub.s32 3, %s645
          %p648 = scmp.lt.s32.totalorder %s647, 2
          %s649 = scalar_select %p648, %s647, 2
          %s650 = smul.u32 128, %s649
          %s651 = smul.u32 %s650, 64
          %p652 = scmp.ne.s32.totalorder 0, %s651
          %s653 = sadd.s32 %s21, %s646
          %s654 = smul.addr %s645, 64
          %s655 = sadd.s32 %s653, %s654
          %s656 = smul.addr %s655, 8
          %s657 = scalar_lea.vmem %s1, %s656
          %s658 = smul.u32 %s649, 64
          // Predicated region
          $region33: #{tpu_custom_call.1} parent=31 // pred_check
            %p659 = pneg %p652
          $region34: #{tpu_custom_call.1} parent=31 // pred_check_branch
            %661 = sbr.rel (%p659) target = $region36
          $region35: #{tpu_custom_call.1} parent=31 // pred_region
            // Predicated region
            $region37: #{tpu_custom_call.1} parent=35 // pred_check
              _
            $region38: #{tpu_custom_call.1} parent=35 // pred_check_branch
              %663 = sbr.rel (0) target = $region40
            $region39: #{tpu_custom_call.1} parent=35 // pred_region
              // Predicated region
              $region59: #{tpu_custom_call.1} parent=39 // pred_check
                _
              $region60: #{tpu_custom_call.1} parent=39 // pred_check_branch
                %838 = sbr.rel (0) target = $region62
              $region61: #{tpu_custom_call.1} parent=39 // pred_region
                %s839 = sshrl.u32 %s658, 6
                // While loop
                $region63: #{tpu_custom_call.1} parent=61 // loop_pre_header
                  _
                $region64: #{tpu_custom_call.1} parent=61 // loop_header
                  %s841 = sphi 0, %s843
                  %p842 = scmp.ge.s32.totalorder %s841, %s839
                  %s846 = sphi 0, %s979
                  %s847 = sphi %s641, %s982
                  %s848 = sphi %s657, %s983
                $region65: #{tpu_custom_call.1} parent=61 // loop_header_branch
                  %845 = sbr.rel (%p842) target = $region69
                $region66: #{tpu_custom_call.1} parent=61 // loop_body
                  %v849 = vld [vmem:[%s847] sm:$0xff]
                  %850 = vst [vmem:[%s848] sm:$0xff] %v849
                  %v851 = vld [vmem:[%s847 + $0x8] sm:$0xff]
                  %852 = vst [vmem:[%s848 + $0x8] sm:$0xff] %v851
                  %v853 = vld [vmem:[%s847 + $0x10] sm:$0xff]
                  %854 = vst [vmem:[%s848 + $0x10] sm:$0xff] %v853
                  %v855 = vld [vmem:[%s847 + $0x18] sm:$0xff]
                  %856 = vst [vmem:[%s848 + $0x18] sm:$0xff] %v855
                  %v857 = vld [vmem:[%s847 + $0x20] sm:$0xff]
                  %858 = vst [vmem:[%s848 + $0x20] sm:$0xff] %v857
                  %v859 = vld [vmem:[%s847 + $0x28] sm:$0xff]
                  %860 = vst [vmem:[%s848 + $0x28] sm:$0xff] %v859
                  %v861 = vld [vmem:[%s847 + $0x30] sm:$0xff]
                  %862 = vst [vmem:[%s848 + $0x30] sm:$0xff] %v861
                  %v863 = vld [vmem:[%s847 + $0x38] sm:$0xff]
                  %864 = vst [vmem:[%s848 + $0x38] sm:$0xff] %v863
                  %v865 = vld [vmem:[%s847 + $0x40] sm:$0xff]
                  %866 = vst [vmem:[%s848 + $0x40] sm:$0xff] %v865
                  %v867 = vld [vmem:[%s847 + $0x48] sm:$0xff]
                  %868 = vst [vmem:[%s848 + $0x48] sm:$0xff] %v867
                  %v869 = vld [vmem:[%s847 + $0x50] sm:$0xff]
                  %870 = vst [vmem:[%s848 + $0x50] sm:$0xff] %v869
                  %v871 = vld [vmem:[%s847 + $0x58] sm:$0xff]
                  %872 = vst [vmem:[%s848 + $0x58] sm:$0xff] %v871
                  %v873 = vld [vmem:[%s847 + $0x60] sm:$0xff]
                  %874 = vst [vmem:[%s848 + $0x60] sm:$0xff] %v873
                  %v875 = vld [vmem:[%s847 + $0x68] sm:$0xff]
                  %876 = vst [vmem:[%s848 + $0x68] sm:$0xff] %v875
                  %v877 = vld [vmem:[%s847 + $0x70] sm:$0xff]
                  %878 = vst [vmem:[%s848 + $0x70] sm:$0xff] %v877
                  %v879 = vld [vmem:[%s847 + $0x78] sm:$0xff]
                  %880 = vst [vmem:[%s848 + $0x78] sm:$0xff] %v879
                  %v881 = vld [vmem:[%s847 + $0x80] sm:$0xff]
                  %882 = vst [vmem:[%s848 + $0x80] sm:$0xff] %v881
                  %v883 = vld [vmem:[%s847 + $0x88] sm:$0xff]
                  %884 = vst [vmem:[%s848 + $0x88] sm:$0xff] %v883
                  %v885 = vld [vmem:[%s847 + $0x90] sm:$0xff]
                  %886 = vst [vmem:[%s848 + $0x90] sm:$0xff] %v885
                  %v887 = vld [vmem:[%s847 + $0x98] sm:$0xff]
                  %888 = vst [vmem:[%s848 + $0x98] sm:$0xff] %v887
                  %v889 = vld [vmem:[%s847 + $0xa0] sm:$0xff]
                  %890 = vst [vmem:[%s848 + $0xa0] sm:$0xff] %v889
                  %v891 = vld [vmem:[%s847 + $0xa8] sm:$0xff]
                  %892 = vst [vmem:[%s848 + $0xa8] sm:$0xff] %v891
                  %v893 = vld [vmem:[%s847 + $0xb0] sm:$0xff]
                  %894 = vst [vmem:[%s848 + $0xb0] sm:$0xff] %v893
                  %v895 = vld [vmem:[%s847 + $0xb8] sm:$0xff]
                  %896 = vst [vmem:[%s848 + $0xb8] sm:$0xff] %v895
                  %v897 = vld [vmem:[%s847 + $0xc0] sm:$0xff]
                  %898 = vst [vmem:[%s848 + $0xc0] sm:$0xff] %v897
                  %v899 = vld [vmem:[%s847 + $0xc8] sm:$0xff]
                  %900 = vst [vmem:[%s848 + $0xc8] sm:$0xff] %v899
                  %v901 = vld [vmem:[%s847 + $0xd0] sm:$0xff]
                  %902 = vst [vmem:[%s848 + $0xd0] sm:$0xff] %v901
                  %v903 = vld [vmem:[%s847 + $0xd8] sm:$0xff]
                  %904 = vst [vmem:[%s848 + $0xd8] sm:$0xff] %v903
                  %v905 = vld [vmem:[%s847 + $0xe0] sm:$0xff]
                  %906 = vst [vmem:[%s848 + $0xe0] sm:$0xff] %v905
                  %v907 = vld [vmem:[%s847 + $0xe8] sm:$0xff]
                  %908 = vst [vmem:[%s848 + $0xe8] sm:$0xff] %v907
                  %v909 = vld [vmem:[%s847 + $0xf0] sm:$0xff]
                  %910 = vst [vmem:[%s848 + $0xf0] sm:$0xff] %v909
                  %v911 = vld [vmem:[%s847 + $0xf8] sm:$0xff]
                  %912 = vst [vmem:[%s848 + $0xf8] sm:$0xff] %v911
                  %v913 = vld [vmem:[%s847 + $0x100] sm:$0xff]
                  %914 = vst [vmem:[%s848 + $0x100] sm:$0xff] %v913
                  %v915 = vld [vmem:[%s847 + $0x108] sm:$0xff]
                  %916 = vst [vmem:[%s848 + $0x108] sm:$0xff] %v915
                  %v917 = vld [vmem:[%s847 + $0x110] sm:$0xff]
                  %918 = vst [vmem:[%s848 + $0x110] sm:$0xff] %v917
                  %v919 = vld [vmem:[%s847 + $0x118] sm:$0xff]
                  %920 = vst [vmem:[%s848 + $0x118] sm:$0xff] %v919
                  %v921 = vld [vmem:[%s847 + $0x120] sm:$0xff]
                  %922 = vst [vmem:[%s848 + $0x120] sm:$0xff] %v921
                  %v923 = vld [vmem:[%s847 + $0x128] sm:$0xff]
                  %924 = vst [vmem:[%s848 + $0x128] sm:$0xff] %v923
                  %v925 = vld [vmem:[%s847 + $0x130] sm:$0xff]
                  %926 = vst [vmem:[%s848 + $0x130] sm:$0xff] %v925
                  %v927 = vld [vmem:[%s847 + $0x138] sm:$0xff]
                  %928 = vst [vmem:[%s848 + $0x138] sm:$0xff] %v927
                  %v929 = vld [vmem:[%s847 + $0x140] sm:$0xff]
                  %930 = vst [vmem:[%s848 + $0x140] sm:$0xff] %v929
                  %v931 = vld [vmem:[%s847 + $0x148] sm:$0xff]
                  %932 = vst [vmem:[%s848 + $0x148] sm:$0xff] %v931
                  %v933 = vld [vmem:[%s847 + $0x150] sm:$0xff]
                  %934 = vst [vmem:[%s848 + $0x150] sm:$0xff] %v933
                  %v935 = vld [vmem:[%s847 + $0x158] sm:$0xff]
                  %936 = vst [vmem:[%s848 + $0x158] sm:$0xff] %v935
                  %v937 = vld [vmem:[%s847 + $0x160] sm:$0xff]
                  %938 = vst [vmem:[%s848 + $0x160] sm:$0xff] %v937
                  %v939 = vld [vmem:[%s847 + $0x168] sm:$0xff]
                  %940 = vst [vmem:[%s848 + $0x168] sm:$0xff] %v939
                  %v941 = vld [vmem:[%s847 + $0x170] sm:$0xff]
                  %942 = vst [vmem:[%s848 + $0x170] sm:$0xff] %v941
                  %v943 = vld [vmem:[%s847 + $0x178] sm:$0xff]
                  %944 = vst [vmem:[%s848 + $0x178] sm:$0xff] %v943
                  %v945 = vld [vmem:[%s847 + $0x180] sm:$0xff]
                  %946 = vst [vmem:[%s848 + $0x180] sm:$0xff] %v945
                  %v947 = vld [vmem:[%s847 + $0x188] sm:$0xff]
                  %948 = vst [vmem:[%s848 + $0x188] sm:$0xff] %v947
                  %v949 = vld [vmem:[%s847 + $0x190] sm:$0xff]
                  %950 = vst [vmem:[%s848 + $0x190] sm:$0xff] %v949
                  %v951 = vld [vmem:[%s847 + $0x198] sm:$0xff]
                  %952 = vst [vmem:[%s848 + $0x198] sm:$0xff] %v951
                  %v953 = vld [vmem:[%s847 + $0x1a0] sm:$0xff]
                  %954 = vst [vmem:[%s848 + $0x1a0] sm:$0xff] %v953
                  %v955 = vld [vmem:[%s847 + $0x1a8] sm:$0xff]
                  %956 = vst [vmem:[%s848 + $0x1a8] sm:$0xff] %v955
                  %v957 = vld [vmem:[%s847 + $0x1b0] sm:$0xff]
                  %958 = vst [vmem:[%s848 + $0x1b0] sm:$0xff] %v957
                  %v959 = vld [vmem:[%s847 + $0x1b8] sm:$0xff]
                  %960 = vst [vmem:[%s848 + $0x1b8] sm:$0xff] %v959
                  %v961 = vld [vmem:[%s847 + $0x1c0] sm:$0xff]
                  %962 = vst [vmem:[%s848 + $0x1c0] sm:$0xff] %v961
                  %v963 = vld [vmem:[%s847 + $0x1c8] sm:$0xff]
                  %964 = vst [vmem:[%s848 + $0x1c8] sm:$0xff] %v963
                  %v965 = vld [vmem:[%s847 + $0x1d0] sm:$0xff]
                  %966 = vst [vmem:[%s848 + $0x1d0] sm:$0xff] %v965
                  %v967 = vld [vmem:[%s847 + $0x1d8] sm:$0xff]
                  %968 = vst [vmem:[%s848 + $0x1d8] sm:$0xff] %v967
                  %v969 = vld [vmem:[%s847 + $0x1e0] sm:$0xff]
                  %970 = vst [vmem:[%s848 + $0x1e0] sm:$0xff] %v969
                  %v971 = vld [vmem:[%s847 + $0x1e8] sm:$0xff]
                  %972 = vst [vmem:[%s848 + $0x1e8] sm:$0xff] %v971
                  %v973 = vld [vmem:[%s847 + $0x1f0] sm:$0xff]
                  %974 = vst [vmem:[%s848 + $0x1f0] sm:$0xff] %v973
                  %v975 = vld [vmem:[%s847 + $0x1f8] sm:$0xff]
                  %976 = vst [vmem:[%s848 + $0x1f8] sm:$0xff] %v975
                  %s977 = sadd.s32 1, %s846
                  %p978 = scmp.ge.s32.totalorder %s977, %s839
                  %s979 = scalar_select %p978, 0, %s977
                  %s980 = smul.u32 %s979, 512
                  %s981 = smul.u32 %s979, 512
                  %s982 = scalar_lea.vmem %s641, %s980 [#allocation4]
                  %s983 = scalar_lea.vmem %s657, %s981
                $region67: #{tpu_custom_call.1} parent=61 // loop_footer
                  %s843 = sadd.s32 %s841, 1
                $region68: #{tpu_custom_call.1} parent=61 // loop_footer_branch
                  %840 = sbr.rel target = $region64
                $region69: #{tpu_custom_call.1} parent=61 // loop_exit
                  _
                %s984 = sshrl.u32 %s658, 6
                %s985 = sand.u32 %s658, 63
                %s986 = smul.u32 %s984, 64
                %s987 = smul.u32 8, %s986
                %s988 = scalar_lea.vmem %s641, %s987 [#allocation4]
                %s989 = smul.u32 8, %s986
                %s990 = scalar_lea.vmem %s657, %s989
                // While loop
                $region70: #{tpu_custom_call.1} parent=61 // loop_pre_header
                  _
                $region71: #{tpu_custom_call.1} parent=61 // loop_header
                  %s992 = sphi 0, %s994
                  %p993 = scmp.ge.s32.totalorder %s992, %s985
                  %s997 = sphi 0, %s1004
                  %s998 = sphi %s988, %s1007
                  %s999 = sphi %s990, %s1008
                $region72: #{tpu_custom_call.1} parent=61 // loop_header_branch
                  %996 = sbr.rel (%p993) target = $region76
                $region73: #{tpu_custom_call.1} parent=61 // loop_body
                  %v1000 = vld [vmem:[%s998] sm:$0xff]
                  %1001 = vst [vmem:[%s999] sm:$0xff] %v1000
                  %s1002 = sadd.s32 1, %s997
                  %p1003 = scmp.ge.s32.totalorder %s1002, %s985
                  %s1004 = scalar_select %p1003, 0, %s1002
                  %s1005 = smul.u32 %s1004, 8
                  %s1006 = smul.u32 %s1004, 8
                  %s1007 = scalar_lea.vmem %s988, %s1005 [#allocation4]
                  %s1008 = scalar_lea.vmem %s990, %s1006
                $region74: #{tpu_custom_call.1} parent=61 // loop_footer
                  %s994 = sadd.s32 %s992, 1
                $region75: #{tpu_custom_call.1} parent=61 // loop_footer_branch
                  %991 = sbr.rel target = $region71
                $region76: #{tpu_custom_call.1} parent=61 // loop_exit
                  _
              $region62: #{tpu_custom_call.1} parent=39 // pred_fallthru
                _
              // Predicated region
              $region77: #{tpu_custom_call.1} parent=39 // pred_check
                _
              $region78: #{tpu_custom_call.1} parent=39 // pred_check_branch
                %1010 = sbr.rel target = $region80
              $region79: #{tpu_custom_call.1} parent=39 // pred_region
                _
              $region80: #{tpu_custom_call.1} parent=39 // pred_fallthru
                _
            $region40: #{tpu_custom_call.1} parent=35 // pred_fallthru
              _
            // Predicated region
            $region41: #{tpu_custom_call.1} parent=35 // pred_check
              _
            $region42: #{tpu_custom_call.1} parent=35 // pred_check_branch
              %665 = sbr.rel target = $region44
            $region43: #{tpu_custom_call.1} parent=35 // pred_region
              %s667 = sshrl.u32 %s658, 6
              // While loop
              $region45: #{tpu_custom_call.1} parent=43 // loop_pre_header
                _
              $region46: #{tpu_custom_call.1} parent=43 // loop_header
                %s669 = sphi 0, %s671
                %p670 = scmp.ge.s32.totalorder %s669, %s667
                %s674 = sphi 0, %s807
                %s675 = sphi %s641, %s810
                %s676 = sphi %s657, %s811
              $region47: #{tpu_custom_call.1} parent=43 // loop_header_branch
                %673 = sbr.rel (%p670) target = $region51
              $region48: #{tpu_custom_call.1} parent=43 // loop_body
                %v677 = vld [vmem:[%s675] sm:$0xff]
                %678 = vst [vmem:[%s676] sm:$0xff] %v677
                %v679 = vld [vmem:[%s675 + $0x8] sm:$0xff]
                %680 = vst [vmem:[%s676 + $0x8] sm:$0xff] %v679
                %v681 = vld [vmem:[%s675 + $0x10] sm:$0xff]
                %682 = vst [vmem:[%s676 + $0x10] sm:$0xff] %v681
                %v683 = vld [vmem:[%s675 + $0x18] sm:$0xff]
                %684 = vst [vmem:[%s676 + $0x18] sm:$0xff] %v683
                %v685 = vld [vmem:[%s675 + $0x20] sm:$0xff]
                %686 = vst [vmem:[%s676 + $0x20] sm:$0xff] %v685
                %v687 = vld [vmem:[%s675 + $0x28] sm:$0xff]
                %688 = vst [vmem:[%s676 + $0x28] sm:$0xff] %v687
                %v689 = vld [vmem:[%s675 + $0x30] sm:$0xff]
                %690 = vst [vmem:[%s676 + $0x30] sm:$0xff] %v689
                %v691 = vld [vmem:[%s675 + $0x38] sm:$0xff]
                %692 = vst [vmem:[%s676 + $0x38] sm:$0xff] %v691
                %v693 = vld [vmem:[%s675 + $0x40] sm:$0xff]
                %694 = vst [vmem:[%s676 + $0x40] sm:$0xff] %v693
                %v695 = vld [vmem:[%s675 + $0x48] sm:$0xff]
                %696 = vst [vmem:[%s676 + $0x48] sm:$0xff] %v695
                %v697 = vld [vmem:[%s675 + $0x50] sm:$0xff]
                %698 = vst [vmem:[%s676 + $0x50] sm:$0xff] %v697
                %v699 = vld [vmem:[%s675 + $0x58] sm:$0xff]
                %700 = vst [vmem:[%s676 + $0x58] sm:$0xff] %v699
                %v701 = vld [vmem:[%s675 + $0x60] sm:$0xff]
                %702 = vst [vmem:[%s676 + $0x60] sm:$0xff] %v701
                %v703 = vld [vmem:[%s675 + $0x68] sm:$0xff]
                %704 = vst [vmem:[%s676 + $0x68] sm:$0xff] %v703
                %v705 = vld [vmem:[%s675 + $0x70] sm:$0xff]
                %706 = vst [vmem:[%s676 + $0x70] sm:$0xff] %v705
                %v707 = vld [vmem:[%s675 + $0x78] sm:$0xff]
                %708 = vst [vmem:[%s676 + $0x78] sm:$0xff] %v707
                %v709 = vld [vmem:[%s675 + $0x80] sm:$0xff]
                %710 = vst [vmem:[%s676 + $0x80] sm:$0xff] %v709
                %v711 = vld [vmem:[%s675 + $0x88] sm:$0xff]
                %712 = vst [vmem:[%s676 + $0x88] sm:$0xff] %v711
                %v713 = vld [vmem:[%s675 + $0x90] sm:$0xff]
                %714 = vst [vmem:[%s676 + $0x90] sm:$0xff] %v713
                %v715 = vld [vmem:[%s675 + $0x98] sm:$0xff]
                %716 = vst [vmem:[%s676 + $0x98] sm:$0xff] %v715
                %v717 = vld [vmem:[%s675 + $0xa0] sm:$0xff]
                %718 = vst [vmem:[%s676 + $0xa0] sm:$0xff] %v717
                %v719 = vld [vmem:[%s675 + $0xa8] sm:$0xff]
                %720 = vst [vmem:[%s676 + $0xa8] sm:$0xff] %v719
                %v721 = vld [vmem:[%s675 + $0xb0] sm:$0xff]
                %722 = vst [vmem:[%s676 + $0xb0] sm:$0xff] %v721
                %v723 = vld [vmem:[%s675 + $0xb8] sm:$0xff]
                %724 = vst [vmem:[%s676 + $0xb8] sm:$0xff] %v723
                %v725 = vld [vmem:[%s675 + $0xc0] sm:$0xff]
                %726 = vst [vmem:[%s676 + $0xc0] sm:$0xff] %v725
                %v727 = vld [vmem:[%s675 + $0xc8] sm:$0xff]
                %728 = vst [vmem:[%s676 + $0xc8] sm:$0xff] %v727
                %v729 = vld [vmem:[%s675 + $0xd0] sm:$0xff]
                %730 = vst [vmem:[%s676 + $0xd0] sm:$0xff] %v729
                %v731 = vld [vmem:[%s675 + $0xd8] sm:$0xff]
                %732 = vst [vmem:[%s676 + $0xd8] sm:$0xff] %v731
                %v733 = vld [vmem:[%s675 + $0xe0] sm:$0xff]
                %734 = vst [vmem:[%s676 + $0xe0] sm:$0xff] %v733
                %v735 = vld [vmem:[%s675 + $0xe8] sm:$0xff]
                %736 = vst [vmem:[%s676 + $0xe8] sm:$0xff] %v735
                %v737 = vld [vmem:[%s675 + $0xf0] sm:$0xff]
                %738 = vst [vmem:[%s676 + $0xf0] sm:$0xff] %v737
                %v739 = vld [vmem:[%s675 + $0xf8] sm:$0xff]
                %740 = vst [vmem:[%s676 + $0xf8] sm:$0xff] %v739
                %v741 = vld [vmem:[%s675 + $0x100] sm:$0xff]
                %742 = vst [vmem:[%s676 + $0x100] sm:$0xff] %v741
                %v743 = vld [vmem:[%s675 + $0x108] sm:$0xff]
                %744 = vst [vmem:[%s676 + $0x108] sm:$0xff] %v743
                %v745 = vld [vmem:[%s675 + $0x110] sm:$0xff]
                %746 = vst [vmem:[%s676 + $0x110] sm:$0xff] %v745
                %v747 = vld [vmem:[%s675 + $0x118] sm:$0xff]
                %748 = vst [vmem:[%s676 + $0x118] sm:$0xff] %v747
                %v749 = vld [vmem:[%s675 + $0x120] sm:$0xff]
                %750 = vst [vmem:[%s676 + $0x120] sm:$0xff] %v749
                %v751 = vld [vmem:[%s675 + $0x128] sm:$0xff]
                %752 = vst [vmem:[%s676 + $0x128] sm:$0xff] %v751
                %v753 = vld [vmem:[%s675 + $0x130] sm:$0xff]
                %754 = vst [vmem:[%s676 + $0x130] sm:$0xff] %v753
                %v755 = vld [vmem:[%s675 + $0x138] sm:$0xff]
                %756 = vst [vmem:[%s676 + $0x138] sm:$0xff] %v755
                %v757 = vld [vmem:[%s675 + $0x140] sm:$0xff]
                %758 = vst [vmem:[%s676 + $0x140] sm:$0xff] %v757
                %v759 = vld [vmem:[%s675 + $0x148] sm:$0xff]
                %760 = vst [vmem:[%s676 + $0x148] sm:$0xff] %v759
                %v761 = vld [vmem:[%s675 + $0x150] sm:$0xff]
                %762 = vst [vmem:[%s676 + $0x150] sm:$0xff] %v761
                %v763 = vld [vmem:[%s675 + $0x158] sm:$0xff]
                %764 = vst [vmem:[%s676 + $0x158] sm:$0xff] %v763
                %v765 = vld [vmem:[%s675 + $0x160] sm:$0xff]
                %766 = vst [vmem:[%s676 + $0x160] sm:$0xff] %v765
                %v767 = vld [vmem:[%s675 + $0x168] sm:$0xff]
                %768 = vst [vmem:[%s676 + $0x168] sm:$0xff] %v767
                %v769 = vld [vmem:[%s675 + $0x170] sm:$0xff]
                %770 = vst [vmem:[%s676 + $0x170] sm:$0xff] %v769
                %v771 = vld [vmem:[%s675 + $0x178] sm:$0xff]
                %772 = vst [vmem:[%s676 + $0x178] sm:$0xff] %v771
                %v773 = vld [vmem:[%s675 + $0x180] sm:$0xff]
                %774 = vst [vmem:[%s676 + $0x180] sm:$0xff] %v773
                %v775 = vld [vmem:[%s675 + $0x188] sm:$0xff]
                %776 = vst [vmem:[%s676 + $0x188] sm:$0xff] %v775
                %v777 = vld [vmem:[%s675 + $0x190] sm:$0xff]
                %778 = vst [vmem:[%s676 + $0x190] sm:$0xff] %v777
                %v779 = vld [vmem:[%s675 + $0x198] sm:$0xff]
                %780 = vst [vmem:[%s676 + $0x198] sm:$0xff] %v779
                %v781 = vld [vmem:[%s675 + $0x1a0] sm:$0xff]
                %782 = vst [vmem:[%s676 + $0x1a0] sm:$0xff] %v781
                %v783 = vld [vmem:[%s675 + $0x1a8] sm:$0xff]
                %784 = vst [vmem:[%s676 + $0x1a8] sm:$0xff] %v783
                %v785 = vld [vmem:[%s675 + $0x1b0] sm:$0xff]
                %786 = vst [vmem:[%s676 + $0x1b0] sm:$0xff] %v785
                %v787 = vld [vmem:[%s675 + $0x1b8] sm:$0xff]
                %788 = vst [vmem:[%s676 + $0x1b8] sm:$0xff] %v787
                %v789 = vld [vmem:[%s675 + $0x1c0] sm:$0xff]
                %790 = vst [vmem:[%s676 + $0x1c0] sm:$0xff] %v789
                %v791 = vld [vmem:[%s675 + $0x1c8] sm:$0xff]
                %792 = vst [vmem:[%s676 + $0x1c8] sm:$0xff] %v791
                %v793 = vld [vmem:[%s675 + $0x1d0] sm:$0xff]
                %794 = vst [vmem:[%s676 + $0x1d0] sm:$0xff] %v793
                %v795 = vld [vmem:[%s675 + $0x1d8] sm:$0xff]
                %796 = vst [vmem:[%s676 + $0x1d8] sm:$0xff] %v795
                %v797 = vld [vmem:[%s675 + $0x1e0] sm:$0xff]
                %798 = vst [vmem:[%s676 + $0x1e0] sm:$0xff] %v797
                %v799 = vld [vmem:[%s675 + $0x1e8] sm:$0xff]
                %800 = vst [vmem:[%s676 + $0x1e8] sm:$0xff] %v799
                %v801 = vld [vmem:[%s675 + $0x1f0] sm:$0xff]
                %802 = vst [vmem:[%s676 + $0x1f0] sm:$0xff] %v801
                %v803 = vld [vmem:[%s675 + $0x1f8] sm:$0xff]
                %804 = vst [vmem:[%s676 + $0x1f8] sm:$0xff] %v803
                %s805 = sadd.s32 1, %s674
                %p806 = scmp.ge.s32.totalorder %s805, %s667
                %s807 = scalar_select %p806, 0, %s805
                %s808 = smul.u32 %s807, 512
                %s809 = smul.u32 %s807, 512
                %s810 = scalar_lea.vmem %s641, %s808 [#allocation4]
                %s811 = scalar_lea.vmem %s657, %s809
              $region49: #{tpu_custom_call.1} parent=43 // loop_footer
                %s671 = sadd.s32 %s669, 1
              $region50: #{tpu_custom_call.1} parent=43 // loop_footer_branch
                %668 = sbr.rel target = $region46
              $region51: #{tpu_custom_call.1} parent=43 // loop_exit
                _
              %s812 = sshrl.u32 %s658, 6
              %s813 = sand.u32 %s658, 63
              %s814 = smul.u32 %s812, 64
              %s815 = smul.u32 8, %s814
              %s816 = scalar_lea.vmem %s641, %s815 [#allocation4]
              %s817 = smul.u32 8, %s814
              %s818 = scalar_lea.vmem %s657, %s817
              // While loop
              $region52: #{tpu_custom_call.1} parent=43 // loop_pre_header
                _
              $region53: #{tpu_custom_call.1} parent=43 // loop_header
                %s820 = sphi 0, %s822
                %p821 = scmp.ge.s32.totalorder %s820, %s813
                %s825 = sphi 0, %s832
                %s826 = sphi %s816, %s835
                %s827 = sphi %s818, %s836
              $region54: #{tpu_custom_call.1} parent=43 // loop_header_branch
                %824 = sbr.rel (%p821) target = $region58
              $region55: #{tpu_custom_call.1} parent=43 // loop_body
                %v828 = vld [vmem:[%s826] sm:$0xff]
                %829 = vst [vmem:[%s827] sm:$0xff] %v828
                %s830 = sadd.s32 1, %s825
                %p831 = scmp.ge.s32.totalorder %s830, %s813
                %s832 = scalar_select %p831, 0, %s830
                %s833 = smul.u32 %s832, 8
                %s834 = smul.u32 %s832, 8
                %s835 = scalar_lea.vmem %s816, %s833 [#allocation4]
                %s836 = scalar_lea.vmem %s818, %s834
              $region56: #{tpu_custom_call.1} parent=43 // loop_footer
                %s822 = sadd.s32 %s820, 1
              $region57: #{tpu_custom_call.1} parent=43 // loop_footer_branch
                %819 = sbr.rel target = $region53
              $region58: #{tpu_custom_call.1} parent=43 // loop_exit
                _
            $region44: #{tpu_custom_call.1} parent=35 // pred_fallthru
              _
          $region36: #{tpu_custom_call.1} parent=31 // pred_fallthru
            _
          %1011 = vnop
        $region32: #{tpu_custom_call.1} parent=23 // pred_fallthru
          _
      $region24: #{tpu_custom_call.1} parent=5 // pred_fallthru
        _
      %p1012 = scmp.le.s32.totalorder 2, %s10
      // Predicated region
      $region81: #{tpu_custom_call.1} parent=5 // pred_check
        %p1013 = pneg %p1012
      $region82: #{tpu_custom_call.1} parent=5 // pred_check_branch
        %1015 = sbr.rel (%p1013) target = $region84
      $region83: #{tpu_custom_call.1} parent=5 // pred_region
        %s1016 = ssub.s32 %s10, 2
        // Predicated region
        $region85: #{tpu_custom_call.1} parent=83 // pred_check
          %p1017 = pneg %p92
        $region86: #{tpu_custom_call.1} parent=83 // pred_check_branch
          %1019 = sbr.rel (%p1017) target = $region88
        $region87: #{tpu_custom_call.1} parent=83 // pred_region
          %s1020 = sand.u32 %s77, 1
          %s1021 = sand.u32 %s77, 1
          %s1022 = smul.addr %s1021, 1024
          %s1023 = scalar_lea.vmem [#allocation4], %s1022
        $region88: #{tpu_custom_call.1} parent=83 // pred_fallthru
          _
      $region84: #{tpu_custom_call.1} parent=5 // pred_fallthru
        _
    $region6: #{tpu_custom_call.1} parent=1 // loop_footer
      %s14 = sadd.s32 1, %s10
    $region7: #{tpu_custom_call.1} parent=1 // loop_footer_branch
      %9 = sbr.rel target = $region3
    $region8: #{tpu_custom_call.1} parent=1 // loop_exit
      _
    %1024 = vsyncpa [#allocation3], 1
    %s1025 = scalar_lea.sflag [#allocation3], 1
    %1026 = vsyncpa %s1025, 1

</llo_original>
